<compile_context>
chip_gen: v5e
topology: v5e:2x2
jax: 0.10.0
libtpu: 0.0.40
codegen_flags: <defaults>
</compile_context>

<pallas_src>
import functools
import math

import jax
import jax.numpy as jnp
from jax.experimental import pallas as pl
from jax.experimental.pallas import tpu as pltpu


# ---------------------------------------------------------------------------
# Fused kernel: one (batch element) per grid step.
# Inputs : x (1,T,C), enc (1,T_E,Ce), WqT (C,C)   [scale pre-folded],
#          bq (1,C)  [scale pre-folded],
#          WkvT (Ce,2C), bkv (1,2C), WpT (C,C), bp (1,C)
# Outputs: y (1,T,C), att_mean (1,T,T_E)
# ---------------------------------------------------------------------------
def _fused_cross_attn_kernel(
    x_ref, e_ref, wqT_ref, bq_ref, wkvT_ref, bkv_ref, wpT_ref, bp_ref,
    y_ref, attm_ref, *, n_head, head_dim, n_embd,
):
    inv_h = 1.0 / float(n_head)

    xb = x_ref[0]            # (T, C)
    eb = e_ref[0]            # (T_E, Ce)
    T = xb.shape[0]
    T_E = eb.shape[0]

    # Q projection.  The 1/sqrt(D) attention scale is already folded into
    # WqT/bq at prep time, so no extra elementwise scale is needed here.
    q = (jnp.dot(xb, wqT_ref[...], preferred_element_type=jnp.float32)
         + bq_ref[...])                                            # (T, C)

    # Fused K/V projection from the encoder output (single MXU dot).
    kv = (jnp.dot(eb, wkvT_ref[...], preferred_element_type=jnp.float32)
          + bkv_ref[...])                                          # (T_E, 2C)
    k = kv[:, :n_embd]                                             # (T_E, C)
    v = kv[:, n_embd:]                                             # (T_E, C)

    wpT = wpT_ref[...]                                             # (C, C)

    acc_y = jnp.zeros((T, n_embd), jnp.float32)
    acc_att = jnp.zeros((T, T_E), jnp.float32)

    # Per-head attention, unrolled (n_head is small & static).  The output
    # projection is fused by contracting each head's yh against the matching
    # D-row slab of WpT, so no (H,T,D)->(T,H,D) layout shuffle is needed.
    for h in range(n_head):
        lo = h * head_dim
        qh = q[:, lo:lo + head_dim]                                # (T, D)
        kh = k[:, lo:lo + head_dim]                                # (T_E, D)
        vh = v[:, lo:lo + head_dim]                                # (T_E, D)

        # scores: qh @ kh^T without materializing a transpose
        s = jax.lax.dot_general(
            qh, kh, (((1,), (1,)), ((), ())),
            preferred_element_type=jnp.float32)                    # (T, T_E)
        s = s - jnp.max(s, axis=-1, keepdims=True)
        p = jnp.exp(s)
        denom = jnp.sum(p, axis=-1, keepdims=True)
        att = p * pl.reciprocal(denom, approx=False)               # softmax

        acc_att = acc_att + att                                    # head mean (later /H)

        # attn_drop is identity in eval mode
        yh = jnp.dot(att, vh, preferred_element_type=jnp.float32)  # (T, D)
        acc_y = acc_y + jnp.dot(
            yh, wpT[lo:lo + head_dim, :],
            preferred_element_type=jnp.float32)                    # (T, C)

    # resid_drop is identity in eval mode
    y_ref[0] = acc_y + bp_ref[...]
    attm_ref[0] = acc_att * inv_h


# ---------------------------------------------------------------------------
# One-time parameter preparation: pre-transpose weights, fuse Wk/Wv, and fold
# the 1/sqrt(head_dim) attention scale into the query projection.
# (Do this at parameter-load time; no per-forward-call HBM transposes.)
# ---------------------------------------------------------------------------
def prepare_params(params, n_head):
    C = params["Wq"].shape[0]
    scale = 1.0 / math.sqrt(C // n_head)
    return {
        "wqT": jnp.asarray(params["Wq"]).T * scale,                           # (C, C)
        "bq": (jnp.asarray(params["bq"]) * scale)[None, :],                   # (1, C)
        "wkvT": jnp.concatenate(
            [jnp.asarray(params["Wk"]).T, jnp.asarray(params["Wv"]).T],
            axis=1),                                                          # (Ce, 2C)
        "bkv": jnp.concatenate(
            [jnp.asarray(params["bk"]), jnp.asarray(params["bv"])])[None, :],  # (1, 2C)
        "wpT": jnp.asarray(params["Wp"]).T,                                   # (C, C)
        "bp": jnp.asarray(params["bp"])[None, :],                             # (1, C)
    }


# ---------------------------------------------------------------------------
# Full CrossAttention forward (single pallas_call)
# ---------------------------------------------------------------------------
def cross_attention_forward(x, encoder_output, prep, n_head):
    B, T, C = x.shape
    _, T_E, Ce = encoder_output.shape
    D = C // n_head

    kernel = functools.partial(
        _fused_cross_attn_kernel, n_head=n_head, head_dim=D, n_embd=C)

    y, att_mean = pl.pallas_call(
        kernel,
        out_shape=(
            jax.ShapeDtypeStruct((B, T, C), jnp.float32),
            jax.ShapeDtypeStruct((B, T, T_E), jnp.float32),
        ),
        grid_spec=pltpu.PrefetchScalarGridSpec(
            num_scalar_prefetch=0,
            grid=(B,),
            in_specs=[
                pl.BlockSpec((1, T, C), lambda b: (b, 0, 0)),     # x
                pl.BlockSpec((1, T_E, Ce), lambda b: (b, 0, 0)),  # encoder_output
                pl.BlockSpec((C, C), lambda b: (0, 0)),           # WqT (resident)
                pl.BlockSpec((1, C), lambda b: (0, 0)),           # bq
                pl.BlockSpec((Ce, 2 * C), lambda b: (0, 0)),      # WkvT (resident)
                pl.BlockSpec((1, 2 * C), lambda b: (0, 0)),       # bkv
                pl.BlockSpec((C, C), lambda b: (0, 0)),           # WpT (resident)
                pl.BlockSpec((1, C), lambda b: (0, 0)),           # bp
            ],
            out_specs=[
                pl.BlockSpec((1, T, C), lambda b: (b, 0, 0)),     # y
                pl.BlockSpec((1, T, T_E), lambda b: (b, 0, 0)),   # att_mean
            ],
        ),
        compiler_params=pltpu.CompilerParams(
            dimension_semantics=("parallel",),
        ),
    )(x, encoder_output,
      prep["wqT"], prep["bq"], prep["wkvT"], prep["bkv"], prep["wpT"], prep["bp"])
    return y, att_mean


# ---------------------------------------------------------------------------
# Pure-JAX reference (for correctness check)
# ---------------------------------------------------------------------------
def cross_attention_ref(x, encoder_output, params, n_head):
    B, T, C = x.shape
    _, T_E, Ce = encoder_output.shape
    D = C // n_head

    def lin(a, w, b):
        return a @ w.T + b

    k = lin(encoder_output, params["Wk"], params["bk"]).reshape(B, T_E, n_head, D).transpose(0, 2, 1, 3)
    q = lin(x, params["Wq"], params["bq"]).reshape(B, T, n_head, D).transpose(0, 2, 1, 3)
    v = lin(encoder_output, params["Wv"], params["bv"]).reshape(B, T_E, n_head, D).transpose(0, 2, 1, 3)

    att = (q @ jnp.swapaxes(k, -2, -1)) * (1.0 / math.sqrt(D))
    att = jax.nn.softmax(att, axis=-1)
    y = att @ v
    y = jnp.transpose(y, (0, 2, 1, 3)).reshape(B, T, C)
    att_mean = att.mean(axis=1)
    y = lin(y, params["Wp"], params["bp"])
    return y, att_mean


if __name__ == "__main__":
    # Small shapes consistent with the module's forward:
    B, T, C = 2, 16, 32          # n_embd = 32
    T_E, Ce = 8, 24              # condition_seq_len = 8, condition_embd = 24
    n_head = 4                   # head_dim = 8

    key = jax.random.PRNGKey(0)
    ks = jax.random.split(key, 10)

    params = {
        "Wk": 0.1 * jax.random.normal(ks[0], (C, Ce), jnp.float32),
        "bk": 0.1 * jax.random.normal(ks[1], (C,), jnp.float32),
        "Wq": 0.1 * jax.random.normal(ks[2], (C, C), jnp.float32),
        "bq": 0.1 * jax.random.normal(ks[3], (C,), jnp.float32),
        "Wv": 0.1 * jax.random.normal(ks[4], (C, Ce), jnp.float32),
        "bv": 0.1 * jax.random.normal(ks[5], (C,), jnp.float32),
        "Wp": 0.1 * jax.random.normal(ks[6], (C, C), jnp.float32),
        "bp": 0.1 * jax.random.normal(ks[7], (C,), jnp.float32),
    }

    x = jax.random.normal(ks[8], (B, T, C), jnp.float32)
    encoder_output = jax.random.normal(ks[9], (B, T_E, Ce), jnp.float32)

    # One-time weight prep (pre-transpose, Wk/Wv fuse, scale fold into Wq/bq)
    prep = prepare_params(params, n_head)

    y, att_mean = cross_attention_forward(x, encoder_output, prep, n_head)
    y = jax.block_until_ready(y)
    att_mean = jax.block_until_ready(att_mean)

    y_ref, att_ref = cross_attention_ref(x, encoder_output, params, n_head)

    assert y.shape == (B, T, C) and att_mean.shape == (B, T, T_E)
    assert jnp.allclose(y, y_ref, atol=1e-4, rtol=1e-4)
    assert jnp.allclose(att_mean, att_ref, atol=1e-4, rtol=1e-4)

    print("KERNEL_OK")
</pallas_src>

<mosaic_0001>
module attributes {stable_mosaic.version = 11 : i64} {
  func.func @_fused_cross_attn_kernel(%arg0: i32, %arg1: memref<1x16x32xf32, #tpu.memory_space<vmem>>, %arg2: memref<1x8x24xf32, #tpu.memory_space<vmem>>, %arg3: memref<32x32xf32, #tpu.memory_space<vmem>>, %arg4: memref<1x32xf32, #tpu.memory_space<vmem>>, %arg5: memref<24x64xf32, #tpu.memory_space<vmem>>, %arg6: memref<1x64xf32, #tpu.memory_space<vmem>>, %arg7: memref<32x32xf32, #tpu.memory_space<vmem>>, %arg8: memref<1x32xf32, #tpu.memory_space<vmem>>, %arg9: memref<1x16x32xf32, #tpu.memory_space<vmem>>, %arg10: memref<1x16x8xf32, #tpu.memory_space<vmem>>) attributes {dimension_semantics = [#tpu.dimension_semantics<parallel>], iteration_bounds = array<i64: 2>, scalar_prefetch = 0 : i64, scratch_operands = 0 : i64, tpu.core_type = #tpu.core_type<tc>, window_params = [{transform_indices = @transform_0, window_bounds = array<i64: 1, 16, 32>}, {transform_indices = @transform_1, window_bounds = array<i64: 1, 8, 24>}, {pipeline_mode = #tpu.pipeline_mode<synchronous>, transform_indices = @transform_2, window_bounds = array<i64: 32, 32>}, {pipeline_mode = #tpu.pipeline_mode<synchronous>, transform_indices = @transform_3, window_bounds = array<i64: 1, 32>}, {pipeline_mode = #tpu.pipeline_mode<synchronous>, transform_indices = @transform_4, window_bounds = array<i64: 24, 64>}, {pipeline_mode = #tpu.pipeline_mode<synchronous>, transform_indices = @transform_5, window_bounds = array<i64: 1, 64>}, {pipeline_mode = #tpu.pipeline_mode<synchronous>, transform_indices = @transform_6, window_bounds = array<i64: 32, 32>}, {pipeline_mode = #tpu.pipeline_mode<synchronous>, transform_indices = @transform_7, window_bounds = array<i64: 1, 32>}, {transform_indices = @transform_8, window_bounds = array<i64: 1, 16, 32>}, {transform_indices = @transform_9, window_bounds = array<i64: 1, 16, 8>}]} {
    %c0 = arith.constant 0 : index
    %c0_0 = arith.constant 0 : index
    %c0_1 = arith.constant 0 : index
    %0 = vector.load %arg1[%c0, %c0_0, %c0_1] : memref<1x16x32xf32, #tpu.memory_space<vmem>>, vector<1x16x32xf32>
    %1 = vector.shape_cast %0 : vector<1x16x32xf32> to vector<16x32xf32>
    %c0_2 = arith.constant 0 : index
    %c0_3 = arith.constant 0 : index
    %c0_4 = arith.constant 0 : index
    %2 = vector.load %arg2[%c0_2, %c0_3, %c0_4] : memref<1x8x24xf32, #tpu.memory_space<vmem>>, vector<1x8x24xf32>
    %3 = vector.shape_cast %2 : vector<1x8x24xf32> to vector<8x24xf32>
    %c0_5 = arith.constant 0 : index
    %c0_6 = arith.constant 0 : index
    %4 = vector.load %arg3[%c0_5, %c0_6] : memref<32x32xf32, #tpu.memory_space<vmem>>, vector<32x32xf32>
    %cst = arith.constant dense<0.000000e+00> : vector<16x32xf32>
    %5 = tpu.matmul %1, %4, %cst {dimension_numbers = #tpu.dot_dimension_numbers<[1], [0], [0], [1], [0, 0, 1, 1], [], []>} : vector<16x32xf32>, vector<32x32xf32>, vector<16x32xf32> -> vector<16x32xf32>
    %c0_7 = arith.constant 0 : index
    %c0_8 = arith.constant 0 : index
    %6 = vector.load %arg4[%c0_7, %c0_8] : memref<1x32xf32, #tpu.memory_space<vmem>>, vector<1x32xf32>
    %7 = vector.broadcast %6 : vector<1x32xf32> to vector<16x32xf32>
    %8 = arith.addf %5, %7 : vector<16x32xf32>
    %c0_9 = arith.constant 0 : index
    %c0_10 = arith.constant 0 : index
    %9 = vector.load %arg5[%c0_9, %c0_10] : memref<24x64xf32, #tpu.memory_space<vmem>>, vector<24x64xf32>
    %cst_11 = arith.constant dense<0.000000e+00> : vector<8x64xf32>
    %10 = tpu.matmul %3, %9, %cst_11 {dimension_numbers = #tpu.dot_dimension_numbers<[1], [0], [0], [1], [0, 0, 1, 1], [], []>} : vector<8x24xf32>, vector<24x64xf32>, vector<8x64xf32> -> vector<8x64xf32>
    %c0_12 = arith.constant 0 : index
    %c0_13 = arith.constant 0 : index
    %11 = vector.load %arg6[%c0_12, %c0_13] : memref<1x64xf32, #tpu.memory_space<vmem>>, vector<1x64xf32>
    %12 = vector.broadcast %11 : vector<1x64xf32> to vector<8x64xf32>
    %13 = arith.addf %10, %12 : vector<8x64xf32>
    %14 = vector.extract_strided_slice %13 {offsets = [0, 0], sizes = [8, 32], strides = [1, 1]} : vector<8x64xf32> to vector<8x32xf32>
    %15 = vector.extract_strided_slice %13 {offsets = [0, 32], sizes = [8, 32], strides = [1, 1]} : vector<8x64xf32> to vector<8x32xf32>
    %c0_14 = arith.constant 0 : index
    %c0_15 = arith.constant 0 : index
    %16 = vector.load %arg7[%c0_14, %c0_15] : memref<32x32xf32, #tpu.memory_space<vmem>>, vector<32x32xf32>
    %cst_16 = arith.constant 0.000000e+00 : f32
    %17 = vector.broadcast %cst_16 : f32 to vector<16x32xf32>
    %cst_17 = arith.constant 0.000000e+00 : f32
    %18 = vector.broadcast %cst_17 : f32 to vector<16x8xf32>
    %19 = vector.extract_strided_slice %8 {offsets = [0, 0], sizes = [16, 8], strides = [1, 1]} : vector<16x32xf32> to vector<16x8xf32>
    %20 = vector.extract_strided_slice %14 {offsets = [0, 0], sizes = [8, 8], strides = [1, 1]} : vector<8x32xf32> to vector<8x8xf32>
    %21 = vector.extract_strided_slice %15 {offsets = [0, 0], sizes = [8, 8], strides = [1, 1]} : vector<8x32xf32> to vector<8x8xf32>
    %cst_18 = arith.constant dense<0.000000e+00> : vector<16x8xf32>
    %22 = tpu.matmul %19, %20, %cst_18 {dimension_numbers = #tpu.dot_dimension_numbers<[1], [1], [0], [0], [0, 0, 1, 0], [], []>} : vector<16x8xf32>, vector<8x8xf32>, vector<16x8xf32> -> vector<16x8xf32>
    %cst_19 = arith.constant dense<0xFF800000> : vector<16xf32>
    %23 = vector.multi_reduction <maximumf>, %22, %cst_19 [1] : vector<16x8xf32> to vector<16xf32>
    %24 = vector.shape_cast %23 : vector<16xf32> to vector<16x1xf32>
    %25 = vector.broadcast %24 : vector<16x1xf32> to vector<16x8xf32>
    %26 = arith.subf %22, %25 : vector<16x8xf32>
    %27 = math.exp %26 : vector<16x8xf32>
    %cst_20 = arith.constant dense<0.000000e+00> : vector<16xf32>
    %28 = vector.multi_reduction <add>, %27, %cst_20 [1] : vector<16x8xf32> to vector<16xf32>
    %29 = vector.shape_cast %28 : vector<16xf32> to vector<16x1xf32>
    %30 = tpu.reciprocal %29 : vector<16x1xf32> -> vector<16x1xf32>
    %31 = vector.broadcast %30 : vector<16x1xf32> to vector<16x8xf32>
    %32 = arith.mulf %27, %31 : vector<16x8xf32>
    %33 = arith.addf %18, %32 : vector<16x8xf32>
    %cst_21 = arith.constant dense<0.000000e+00> : vector<16x8xf32>
    %34 = tpu.matmul %32, %21, %cst_21 {dimension_numbers = #tpu.dot_dimension_numbers<[1], [0], [0], [1], [0, 0, 1, 1], [], []>} : vector<16x8xf32>, vector<8x8xf32>, vector<16x8xf32> -> vector<16x8xf32>
    %35 = vector.extract_strided_slice %16 {offsets = [0, 0], sizes = [8, 32], strides = [1, 1]} : vector<32x32xf32> to vector<8x32xf32>
    %cst_22 = arith.constant dense<0.000000e+00> : vector<16x32xf32>
    %36 = tpu.matmul %34, %35, %cst_22 {dimension_numbers = #tpu.dot_dimension_numbers<[1], [0], [0], [1], [0, 0, 1, 1], [], []>} : vector<16x8xf32>, vector<8x32xf32>, vector<16x32xf32> -> vector<16x32xf32>
    %37 = arith.addf %17, %36 : vector<16x32xf32>
    %38 = vector.extract_strided_slice %8 {offsets = [0, 8], sizes = [16, 8], strides = [1, 1]} : vector<16x32xf32> to vector<16x8xf32>
    %39 = vector.extract_strided_slice %14 {offsets = [0, 8], sizes = [8, 8], strides = [1, 1]} : vector<8x32xf32> to vector<8x8xf32>
    %40 = vector.extract_strided_slice %15 {offsets = [0, 8], sizes = [8, 8], strides = [1, 1]} : vector<8x32xf32> to vector<8x8xf32>
    %cst_23 = arith.constant dense<0.000000e+00> : vector<16x8xf32>
    %41 = tpu.matmul %38, %39, %cst_23 {dimension_numbers = #tpu.dot_dimension_numbers<[1], [1], [0], [0], [0, 0, 1, 0], [], []>} : vector<16x8xf32>, vector<8x8xf32>, vector<16x8xf32> -> vector<16x8xf32>
    %cst_24 = arith.constant dense<0xFF800000> : vector<16xf32>
    %42 = vector.multi_reduction <maximumf>, %41, %cst_24 [1] : vector<16x8xf32> to vector<16xf32>
    %43 = vector.shape_cast %42 : vector<16xf32> to vector<16x1xf32>
    %44 = vector.broadcast %43 : vector<16x1xf32> to vector<16x8xf32>
    %45 = arith.subf %41, %44 : vector<16x8xf32>
    %46 = math.exp %45 : vector<16x8xf32>
    %cst_25 = arith.constant dense<0.000000e+00> : vector<16xf32>
    %47 = vector.multi_reduction <add>, %46, %cst_25 [1] : vector<16x8xf32> to vector<16xf32>
    %48 = vector.shape_cast %47 : vector<16xf32> to vector<16x1xf32>
    %49 = tpu.reciprocal %48 : vector<16x1xf32> -> vector<16x1xf32>
    %50 = vector.broadcast %49 : vector<16x1xf32> to vector<16x8xf32>
    %51 = arith.mulf %46, %50 : vector<16x8xf32>
    %52 = arith.addf %33, %51 : vector<16x8xf32>
    %cst_26 = arith.constant dense<0.000000e+00> : vector<16x8xf32>
    %53 = tpu.matmul %51, %40, %cst_26 {dimension_numbers = #tpu.dot_dimension_numbers<[1], [0], [0], [1], [0, 0, 1, 1], [], []>} : vector<16x8xf32>, vector<8x8xf32>, vector<16x8xf32> -> vector<16x8xf32>
    %54 = vector.extract_strided_slice %16 {offsets = [8, 0], sizes = [8, 32], strides = [1, 1]} : vector<32x32xf32> to vector<8x32xf32>
    %cst_27 = arith.constant dense<0.000000e+00> : vector<16x32xf32>
    %55 = tpu.matmul %53, %54, %cst_27 {dimension_numbers = #tpu.dot_dimension_numbers<[1], [0], [0], [1], [0, 0, 1, 1], [], []>} : vector<16x8xf32>, vector<8x32xf32>, vector<16x32xf32> -> vector<16x32xf32>
    %56 = arith.addf %37, %55 : vector<16x32xf32>
    %57 = vector.extract_strided_slice %8 {offsets = [0, 16], sizes = [16, 8], strides = [1, 1]} : vector<16x32xf32> to vector<16x8xf32>
    %58 = vector.extract_strided_slice %14 {offsets = [0, 16], sizes = [8, 8], strides = [1, 1]} : vector<8x32xf32> to vector<8x8xf32>
    %59 = vector.extract_strided_slice %15 {offsets = [0, 16], sizes = [8, 8], strides = [1, 1]} : vector<8x32xf32> to vector<8x8xf32>
    %cst_28 = arith.constant dense<0.000000e+00> : vector<16x8xf32>
    %60 = tpu.matmul %57, %58, %cst_28 {dimension_numbers = #tpu.dot_dimension_numbers<[1], [1], [0], [0], [0, 0, 1, 0], [], []>} : vector<16x8xf32>, vector<8x8xf32>, vector<16x8xf32> -> vector<16x8xf32>
    %cst_29 = arith.constant dense<0xFF800000> : vector<16xf32>
    %61 = vector.multi_reduction <maximumf>, %60, %cst_29 [1] : vector<16x8xf32> to vector<16xf32>
    %62 = vector.shape_cast %61 : vector<16xf32> to vector<16x1xf32>
    %63 = vector.broadcast %62 : vector<16x1xf32> to vector<16x8xf32>
    %64 = arith.subf %60, %63 : vector<16x8xf32>
    %65 = math.exp %64 : vector<16x8xf32>
    %cst_30 = arith.constant dense<0.000000e+00> : vector<16xf32>
    %66 = vector.multi_reduction <add>, %65, %cst_30 [1] : vector<16x8xf32> to vector<16xf32>
    %67 = vector.shape_cast %66 : vector<16xf32> to vector<16x1xf32>
    %68 = tpu.reciprocal %67 : vector<16x1xf32> -> vector<16x1xf32>
    %69 = vector.broadcast %68 : vector<16x1xf32> to vector<16x8xf32>
    %70 = arith.mulf %65, %69 : vector<16x8xf32>
    %71 = arith.addf %52, %70 : vector<16x8xf32>
    %cst_31 = arith.constant dense<0.000000e+00> : vector<16x8xf32>
    %72 = tpu.matmul %70, %59, %cst_31 {dimension_numbers = #tpu.dot_dimension_numbers<[1], [0], [0], [1], [0, 0, 1, 1], [], []>} : vector<16x8xf32>, vector<8x8xf32>, vector<16x8xf32> -> vector<16x8xf32>
    %73 = vector.extract_strided_slice %16 {offsets = [16, 0], sizes = [8, 32], strides = [1, 1]} : vector<32x32xf32> to vector<8x32xf32>
    %cst_32 = arith.constant dense<0.000000e+00> : vector<16x32xf32>
    %74 = tpu.matmul %72, %73, %cst_32 {dimension_numbers = #tpu.dot_dimension_numbers<[1], [0], [0], [1], [0, 0, 1, 1], [], []>} : vector<16x8xf32>, vector<8x32xf32>, vector<16x32xf32> -> vector<16x32xf32>
    %75 = arith.addf %56, %74 : vector<16x32xf32>
    %76 = vector.extract_strided_slice %8 {offsets = [0, 24], sizes = [16, 8], strides = [1, 1]} : vector<16x32xf32> to vector<16x8xf32>
    %77 = vector.extract_strided_slice %14 {offsets = [0, 24], sizes = [8, 8], strides = [1, 1]} : vector<8x32xf32> to vector<8x8xf32>
    %78 = vector.extract_strided_slice %15 {offsets = [0, 24], sizes = [8, 8], strides = [1, 1]} : vector<8x32xf32> to vector<8x8xf32>
    %cst_33 = arith.constant dense<0.000000e+00> : vector<16x8xf32>
    %79 = tpu.matmul %76, %77, %cst_33 {dimension_numbers = #tpu.dot_dimension_numbers<[1], [1], [0], [0], [0, 0, 1, 0], [], []>} : vector<16x8xf32>, vector<8x8xf32>, vector<16x8xf32> -> vector<16x8xf32>
    %cst_34 = arith.constant dense<0xFF800000> : vector<16xf32>
    %80 = vector.multi_reduction <maximumf>, %79, %cst_34 [1] : vector<16x8xf32> to vector<16xf32>
    %81 = vector.shape_cast %80 : vector<16xf32> to vector<16x1xf32>
    %82 = vector.broadcast %81 : vector<16x1xf32> to vector<16x8xf32>
    %83 = arith.subf %79, %82 : vector<16x8xf32>
    %84 = math.exp %83 : vector<16x8xf32>
    %cst_35 = arith.constant dense<0.000000e+00> : vector<16xf32>
    %85 = vector.multi_reduction <add>, %84, %cst_35 [1] : vector<16x8xf32> to vector<16xf32>
    %86 = vector.shape_cast %85 : vector<16xf32> to vector<16x1xf32>
    %87 = tpu.reciprocal %86 : vector<16x1xf32> -> vector<16x1xf32>
    %88 = vector.broadcast %87 : vector<16x1xf32> to vector<16x8xf32>
    %89 = arith.mulf %84, %88 : vector<16x8xf32>
    %90 = arith.addf %71, %89 : vector<16x8xf32>
    %cst_36 = arith.constant dense<0.000000e+00> : vector<16x8xf32>
    %91 = tpu.matmul %89, %78, %cst_36 {dimension_numbers = #tpu.dot_dimension_numbers<[1], [0], [0], [1], [0, 0, 1, 1], [], []>} : vector<16x8xf32>, vector<8x8xf32>, vector<16x8xf32> -> vector<16x8xf32>
    %92 = vector.extract_strided_slice %16 {offsets = [24, 0], sizes = [8, 32], strides = [1, 1]} : vector<32x32xf32> to vector<8x32xf32>
    %cst_37 = arith.constant dense<0.000000e+00> : vector<16x32xf32>
    %93 = tpu.matmul %91, %92, %cst_37 {dimension_numbers = #tpu.dot_dimension_numbers<[1], [0], [0], [1], [0, 0, 1, 1], [], []>} : vector<16x8xf32>, vector<8x32xf32>, vector<16x32xf32> -> vector<16x32xf32>
    %94 = arith.addf %75, %93 : vector<16x32xf32>
    %c0_38 = arith.constant 0 : index
    %c0_39 = arith.constant 0 : index
    %95 = vector.load %arg8[%c0_38, %c0_39] : memref<1x32xf32, #tpu.memory_space<vmem>>, vector<1x32xf32>
    %96 = vector.broadcast %95 : vector<1x32xf32> to vector<16x32xf32>
    %97 = arith.addf %94, %96 : vector<16x32xf32>
    %c0_40 = arith.constant 0 : index
    %c0_41 = arith.constant 0 : index
    %c0_42 = arith.constant 0 : index
    %98 = vector.load %arg9[%c0_40, %c0_41, %c0_42] : memref<1x16x32xf32, #tpu.memory_space<vmem>>, vector<1x16x32xf32>
    %99 = vector.shape_cast %98 : vector<1x16x32xf32> to vector<16x32xf32>
    %100 = vector.shape_cast %97 : vector<16x32xf32> to vector<1x16x32xf32>
    tpu.vector_store %arg9[%c0_40, %c0_41, %c0_42], %100 {strides = array<i32>} : memref<1x16x32xf32, #tpu.memory_space<vmem>>, vector<1x16x32xf32>,
    %cst_43 = arith.constant 2.500000e-01 : f32
    %101 = vector.broadcast %cst_43 : f32 to vector<16x8xf32>
    %102 = arith.mulf %90, %101 : vector<16x8xf32>
    %c0_44 = arith.constant 0 : index
    %c0_45 = arith.constant 0 : index
    %c0_46 = arith.constant 0 : index
    %103 = vector.load %arg10[%c0_44, %c0_45, %c0_46] : memref<1x16x8xf32, #tpu.memory_space<vmem>>, vector<1x16x8xf32>
    %104 = vector.shape_cast %103 : vector<1x16x8xf32> to vector<16x8xf32>
    %105 = vector.shape_cast %102 : vector<16x8xf32> to vector<1x16x8xf32>
    tpu.vector_store %arg10[%c0_44, %c0_45, %c0_46], %105 {strides = array<i32>} : memref<1x16x8xf32, #tpu.memory_space<vmem>>, vector<1x16x8xf32>,
    return
  }
  func.func @transform_0(%arg0: i32) -> (i32, i32, i32) {
    %c0_i32 = arith.constant 0 : i32
    %c0_i32_0 = arith.constant 0 : i32
    %c0_i32_1 = arith.constant 0 : i32
    return %arg0, %c0_i32, %c0_i32_0 : i32, i32, i32
  }
  func.func @transform_1(%arg0: i32) -> (i32, i32, i32) {
    %c0_i32 = arith.constant 0 : i32
    %c0_i32_0 = arith.constant 0 : i32
    %c0_i32_1 = arith.constant 0 : i32
    return %arg0, %c0_i32, %c0_i32_0 : i32, i32, i32
  }
  func.func @transform_2(%arg0: i32) -> (i32, i32) {
    %c0_i32 = arith.constant 0 : i32
    %c0_i32_0 = arith.constant 0 : i32
    %c0_i32_1 = arith.constant 0 : i32
    return %c0_i32, %c0_i32_0 : i32, i32
  }
  func.func @transform_3(%arg0: i32) -> (i32, i32) {
    %c0_i32 = arith.constant 0 : i32
    %c0_i32_0 = arith.constant 0 : i32
    %c0_i32_1 = arith.constant 0 : i32
    return %c0_i32, %c0_i32_0 : i32, i32
  }
  func.func @transform_4(%arg0: i32) -> (i32, i32) {
    %c0_i32 = arith.constant 0 : i32
    %c0_i32_0 = arith.constant 0 : i32
    %c0_i32_1 = arith.constant 0 : i32
    return %c0_i32, %c0_i32_0 : i32, i32
  }
  func.func @transform_5(%arg0: i32) -> (i32, i32) {
    %c0_i32 = arith.constant 0 : i32
    %c0_i32_0 = arith.constant 0 : i32
    %c0_i32_1 = arith.constant 0 : i32
    return %c0_i32, %c0_i32_0 : i32, i32
  }
  func.func @transform_6(%arg0: i32) -> (i32, i32) {
    %c0_i32 = arith.constant 0 : i32
    %c0_i32_0 = arith.constant 0 : i32
    %c0_i32_1 = arith.constant 0 : i32
    return %c0_i32, %c0_i32_0 : i32, i32
  }
  func.func @transform_7(%arg0: i32) -> (i32, i32) {
    %c0_i32 = arith.constant 0 : i32
    %c0_i32_0 = arith.constant 0 : i32
    %c0_i32_1 = arith.constant 0 : i32
    return %c0_i32, %c0_i32_0 : i32, i32
  }
  func.func @transform_8(%arg0: i32) -> (i32, i32, i32) {
    %c0_i32 = arith.constant 0 : i32
    %c0_i32_0 = arith.constant 0 : i32
    %c0_i32_1 = arith.constant 0 : i32
    return %arg0, %c0_i32, %c0_i32_0 : i32, i32, i32
  }
  func.func @transform_9(%arg0: i32) -> (i32, i32, i32) {
    %c0_i32 = arith.constant 0 : i32
    %c0_i32_0 = arith.constant 0 : i32
    %c0_i32_1 = arith.constant 0 : i32
    return %arg0, %c0_i32, %c0_i32_0 : i32, i32, i32
  }
}

</mosaic_0001>

<llo_original>
// kernel: tpu_custom_call.1
$region0: #{tpu_custom_call.1}
  #allocation0 [shape = 'u32[]', space=smem, size = 0x4, offset = 0x4, fixed_abs, tag = 'smem constant byte address 0x4 - core index']
  #allocation1 [shape = 'u32[72,128]{1,0:T(1,128)}', space=vmem, size = 0x9000, scoped, tag = 'internal scratch']
  %s0 = inlined_call_operand.hbm [shape: f32[2,16,32], index: 0, kind: input, shape index: {}]
  %s1 = inlined_call_operand.hbm [shape: f32[2,8,24], index: 1, kind: input, shape index: {}]
  %s2 = inlined_call_operand.hbm [shape: f32[32,32], index: 2, kind: input, shape index: {}]
  %s3 = inlined_call_operand.vmem [shape: f32[1,32], index: 3, kind: input, shape index: {}]
  %s4 = inlined_call_operand.hbm [shape: f32[24,64], index: 4, kind: input, shape index: {}]
  %s5 = inlined_call_operand.vmem [shape: f32[1,64], index: 5, kind: input, shape index: {}]
  %s6 = inlined_call_operand.hbm [shape: f32[32,32], index: 6, kind: input, shape index: {}]
  %s7 = inlined_call_operand.vmem [shape: f32[1,32], index: 7, kind: input, shape index: {}]
  %s8 = inlined_call_operand.hbm [shape: f32[2,16,32], index: 8, kind: output, shape index: {0}]
  %s9 = inlined_call_operand.vmem [shape: f32[2,16,8], index: 9, kind: output, shape index: {1}]
  %10 = xla_tuple %s8, %s9
  %s11 = sld [smem:[#allocation0]]
  $region93: #{tpu_custom_call.1} parent=0
    _
  %s13 = ssub.s32 1, %s11
  %s14 = scalar_select 0, %s13, %s11
  $region1: #{tpu_custom_call.1} parent=0
    #allocation2 [shape = 'u8[16384]{0}', space=vmem, size = 0x4000, scoped, tag = 'input window, operand 0']
    #allocation3 [shape = 's32[2]{0}', space=sflag, size = 0x8, scoped, tag = 'scoped memory for tpu_custom_call.1']
    #allocation4 [shape = 's32[2]{0}', space=sflag, size = 0x8, scoped, tag = 'scoped memory for tpu_custom_call.1']
    #allocation5 [shape = 'u8[8192]{0}', space=vmem, size = 0x2000, scoped, tag = 'input window, operand 1']
    #allocation6 [shape = 's32[2]{0}', space=sflag, size = 0x8, scoped, tag = 'scoped memory for tpu_custom_call.1']
    #allocation7 [shape = 'u8[16384]{0}', space=vmem, size = 0x4000, scoped, tag = 'input window, operand 2, single buffered']
    #allocation8 [shape = 'u8[12288]{0}', space=vmem, size = 0x3000, scoped, tag = 'input window, operand 4, single buffered']
    #allocation9 [shape = 's32[1]{0}', space=sflag, size = 0x4, scoped, tag = 'scoped memory for tpu_custom_call.1']
    #allocation10 [shape = 'u8[16384]{0}', space=vmem, size = 0x4000, scoped, tag = 'input window, operand 6, single buffered']
    #allocation11 [shape = 'u8[16384]{0}', space=vmem, size = 0x4000, scoped, tag = 'output window, operand 0']
    %15 = vsyncpa [#allocation3], 0
    %s16 = scalar_lea.sflag [#allocation3], 1
    %17 = vsyncpa %s16, 0
    %18 = vsyncpa [#allocation6], 0
    %s19 = scalar_lea.sflag [#allocation6], 1
    %20 = vsyncpa %s19, 0
    %21 = vsyncpa [#allocation9], 0
    %22 = vsyncpa [#allocation4], 0
    %s23 = scalar_lea.sflag [#allocation4], 1
    %24 = vsyncpa %s23, 0
    loop: start=0, step=1, limit=4
    $region2: #{tpu_custom_call.1} parent=1 // loop_pre_header
      _
    $region3: #{tpu_custom_call.1} parent=1 // loop_header
      %s26 = sphi 0, %s30
      %p27 = scmp.ge.s32.totalorder %s26, 4
      %s36 = sphi 0, %s38
      %s39 = sphi 0, %s36
      %s40 = sphi 0, %s39
      %s56 = sphi 0, %s40
      %s62 = sphi 0, %s64
      %s65 = sphi 0, %s62
      %s66 = sphi 0, %s65
      %s82 = sphi 0, %s66
      %s86 = sphi 0, %s86
      %s88 = sphi 0, %s86
      %s89 = sphi 0, %s88
      %s103 = sphi 0, %s89
      %s107 = sphi 0, %s107
      %s109 = sphi 0, %s107
      %s110 = sphi 0, %s109
      %s124 = sphi 0, %s110
      %s128 = sphi 0, %s128
      %s130 = sphi 0, %s128
      %s131 = sphi 0, %s130
      %s145 = sphi 0, %s131
      %s149 = sphi 0, %s149
      %s151 = sphi 0, %s149
      %s152 = sphi 0, %s151
      %s166 = sphi 0, %s152
      %s170 = sphi 0, %s170
      %s172 = sphi 0, %s170
      %s173 = sphi 0, %s172
      %s187 = sphi 0, %s173
      %s191 = sphi 0, %s191
      %s193 = sphi 0, %s191
      %s194 = sphi 0, %s193
      %s208 = sphi 0, %s194
      %s214 = sphi 0, %s216
      %s217 = sphi 0, %s214
      %s218 = sphi 0, %s217
      %s234 = sphi 0, %s218
      %s240 = sphi 0, %s242
      %s243 = sphi 0, %s240
      %s244 = sphi 0, %s243
      %s260 = sphi 0, %s244
    $region4: #{tpu_custom_call.1} parent=1 // loop_header_branch
      %29 = sbr.rel (%p27) target = $region8
    $region5: #{tpu_custom_call.1} parent=1 // loop_body
      %s31 = ssub.s32 %s26, 1
      %s32 = ssub.s32 %s26, 2
      %s33 = sadd.s32 %s26, 1
      %s34 = ssub.s32 %s26, %s33
      %p35 = scmp.eq.s32.totalorder %s34, 0
      %s37 = sadd.s32 %s36, 1
      %s38 = scalar_select %p35, %s36, %s37
      %p41 = pneg %p35
      %p42 = scmp.eq.s32.totalorder %s26, 1
      %p43 = por %p41, %p42
      %p44 = scmp.ne.s32.totalorder %s36, %s39
      %p45 = scmp.eq.s32.totalorder %s26, 0
      %p46 = por %p44, %p45
      %p47 = scmp.ne.s32.totalorder %s36, %s39
      %p48 = scmp.eq.s32.totalorder %s31, 1
      %p49 = por %p47, %p48
      %p50 = scmp.ne.s32.totalorder %s39, %s40
      %p51 = scmp.eq.s32.totalorder %s31, 0
      %p52 = por %p50, %p51
      %p53 = scmp.ne.s32.totalorder %s39, %s40
      %p54 = scmp.eq.s32.totalorder %s32, 1
      %p55 = por %p53, %p54
      %p57 = scmp.ne.s32.totalorder %s40, %s56
      %p58 = scmp.eq.s32.totalorder %s32, 0
      %p59 = por %p57, %p58
      %s60 = ssub.s32 %s26, %s33
      %p61 = scmp.eq.s32.totalorder %s60, 0
      %s63 = sadd.s32 %s62, 1
      %s64 = scalar_select %p61, %s62, %s63
      %p67 = pneg %p61
      %p68 = scmp.eq.s32.totalorder %s26, 1
      %p69 = por %p67, %p68
      %p70 = scmp.ne.s32.totalorder %s62, %s65
      %p71 = scmp.eq.s32.totalorder %s26, 0
      %p72 = por %p70, %p71
      %p73 = scmp.ne.s32.totalorder %s62, %s65
      %p74 = scmp.eq.s32.totalorder %s31, 1
      %p75 = por %p73, %p74
      %p76 = scmp.ne.s32.totalorder %s65, %s66
      %p77 = scmp.eq.s32.totalorder %s31, 0
      %p78 = por %p76, %p77
      %p79 = scmp.ne.s32.totalorder %s65, %s66
      %p80 = scmp.eq.s32.totalorder %s32, 1
      %p81 = por %p79, %p80
      %p83 = scmp.ne.s32.totalorder %s66, %s82
      %p84 = scmp.eq.s32.totalorder %s32, 0
      %p85 = por %p83, %p84
      %s87 = sadd.s32 %s86, 1
      %p90 = scmp.eq.s32.totalorder %s26, 1
      %p91 = scmp.ne.s32.totalorder %s86, %s88
      %p92 = scmp.eq.s32.totalorder %s26, 0
      %p93 = por %p91, %p92
      %p94 = scmp.ne.s32.totalorder %s86, %s88
      %p95 = scmp.eq.s32.totalorder %s31, 1
      %p96 = por %p94, %p95
      %p97 = scmp.ne.s32.totalorder %s88, %s89
      %p98 = scmp.eq.s32.totalorder %s31, 0
      %p99 = por %p97, %p98
      %p100 = scmp.ne.s32.totalorder %s88, %s89
      %p101 = scmp.eq.s32.totalorder %s32, 1
      %p102 = por %p100, %p101
      %p104 = scmp.ne.s32.totalorder %s89, %s103
      %p105 = scmp.eq.s32.totalorder %s32, 0
      %p106 = por %p104, %p105
      %s108 = sadd.s32 %s107, 1
      %p111 = scmp.eq.s32.totalorder %s26, 1
      %p112 = scmp.ne.s32.totalorder %s107, %s109
      %p113 = scmp.eq.s32.totalorder %s26, 0
      %p114 = por %p112, %p113
      %p115 = scmp.ne.s32.totalorder %s107, %s109
      %p116 = scmp.eq.s32.totalorder %s31, 1
      %p117 = por %p115, %p116
      %p118 = scmp.ne.s32.totalorder %s109, %s110
      %p119 = scmp.eq.s32.totalorder %s31, 0
      %p120 = por %p118, %p119
      %p121 = scmp.ne.s32.totalorder %s109, %s110
      %p122 = scmp.eq.s32.totalorder %s32, 1
      %p123 = por %p121, %p122
      %p125 = scmp.ne.s32.totalorder %s110, %s124
      %p126 = scmp.eq.s32.totalorder %s32, 0
      %p127 = por %p125, %p126
      %s129 = sadd.s32 %s128, 1
      %p132 = scmp.eq.s32.totalorder %s26, 1
      %p133 = scmp.ne.s32.totalorder %s128, %s130
      %p134 = scmp.eq.s32.totalorder %s26, 0
      %p135 = por %p133, %p134
      %p136 = scmp.ne.s32.totalorder %s128, %s130
      %p137 = scmp.eq.s32.totalorder %s31, 1
      %p138 = por %p136, %p137
      %p139 = scmp.ne.s32.totalorder %s130, %s131
      %p140 = scmp.eq.s32.totalorder %s31, 0
      %p141 = por %p139, %p140
      %p142 = scmp.ne.s32.totalorder %s130, %s131
      %p143 = scmp.eq.s32.totalorder %s32, 1
      %p144 = por %p142, %p143
      %p146 = scmp.ne.s32.totalorder %s131, %s145
      %p147 = scmp.eq.s32.totalorder %s32, 0
      %p148 = por %p146, %p147
      %s150 = sadd.s32 %s149, 1
      %p153 = scmp.eq.s32.totalorder %s26, 1
      %p154 = scmp.ne.s32.totalorder %s149, %s151
      %p155 = scmp.eq.s32.totalorder %s26, 0
      %p156 = por %p154, %p155
      %p157 = scmp.ne.s32.totalorder %s149, %s151
      %p158 = scmp.eq.s32.totalorder %s31, 1
      %p159 = por %p157, %p158
      %p160 = scmp.ne.s32.totalorder %s151, %s152
      %p161 = scmp.eq.s32.totalorder %s31, 0
      %p162 = por %p160, %p161
      %p163 = scmp.ne.s32.totalorder %s151, %s152
      %p164 = scmp.eq.s32.totalorder %s32, 1
      %p165 = por %p163, %p164
      %p167 = scmp.ne.s32.totalorder %s152, %s166
      %p168 = scmp.eq.s32.totalorder %s32, 0
      %p169 = por %p167, %p168
      %s171 = sadd.s32 %s170, 1
      %p174 = scmp.eq.s32.totalorder %s26, 1
      %p175 = scmp.ne.s32.totalorder %s170, %s172
      %p176 = scmp.eq.s32.totalorder %s26, 0
      %p177 = por %p175, %p176
      %p178 = scmp.ne.s32.totalorder %s170, %s172
      %p179 = scmp.eq.s32.totalorder %s31, 1
      %p180 = por %p178, %p179
      %p181 = scmp.ne.s32.totalorder %s172, %s173
      %p182 = scmp.eq.s32.totalorder %s31, 0
      %p183 = por %p181, %p182
      %p184 = scmp.ne.s32.totalorder %s172, %s173
      %p185 = scmp.eq.s32.totalorder %s32, 1
      %p186 = por %p184, %p185
      %p188 = scmp.ne.s32.totalorder %s173, %s187
      %p189 = scmp.eq.s32.totalorder %s32, 0
      %p190 = por %p188, %p189
      %s192 = sadd.s32 %s191, 1
      %p195 = scmp.eq.s32.totalorder %s26, 1
      %p196 = scmp.ne.s32.totalorder %s191, %s193
      %p197 = scmp.eq.s32.totalorder %s26, 0
      %p198 = por %p196, %p197
      %p199 = scmp.ne.s32.totalorder %s191, %s193
      %p200 = scmp.eq.s32.totalorder %s31, 1
      %p201 = por %p199, %p200
      %p202 = scmp.ne.s32.totalorder %s193, %s194
      %p203 = scmp.eq.s32.totalorder %s31, 0
      %p204 = por %p202, %p203
      %p205 = scmp.ne.s32.totalorder %s193, %s194
      %p206 = scmp.eq.s32.totalorder %s32, 1
      %p207 = por %p205, %p206
      %p209 = scmp.ne.s32.totalorder %s194, %s208
      %p210 = scmp.eq.s32.totalorder %s32, 0
      %p211 = por %p209, %p210
      %s212 = ssub.s32 %s26, %s33
      %p213 = scmp.eq.s32.totalorder %s212, 0
      %s215 = sadd.s32 %s214, 1
      %s216 = scalar_select %p213, %s214, %s215
      %p219 = pneg %p213
      %p220 = scmp.eq.s32.totalorder %s26, 1
      %p221 = por %p219, %p220
      %p222 = scmp.ne.s32.totalorder %s214, %s217
      %p223 = scmp.eq.s32.totalorder %s26, 0
      %p224 = por %p222, %p223
      %p225 = scmp.ne.s32.totalorder %s214, %s217
      %p226 = scmp.eq.s32.totalorder %s31, 1
      %p227 = por %p225, %p226
      %p228 = scmp.ne.s32.totalorder %s217, %s218
      %p229 = scmp.eq.s32.totalorder %s31, 0
      %p230 = por %p228, %p229
      %p231 = scmp.ne.s32.totalorder %s217, %s218
      %p232 = scmp.eq.s32.totalorder %s32, 1
      %p233 = por %p231, %p232
      %p235 = scmp.ne.s32.totalorder %s218, %s234
      %p236 = scmp.eq.s32.totalorder %s32, 0
      %p237 = por %p235, %p236
      %s238 = ssub.s32 %s26, %s33
      %p239 = scmp.eq.s32.totalorder %s238, 0
      %s241 = sadd.s32 %s240, 1
      %s242 = scalar_select %p239, %s240, %s241
      %p245 = pneg %p239
      %p246 = scmp.eq.s32.totalorder %s26, 1
      %p247 = por %p245, %p246
      %p248 = scmp.ne.s32.totalorder %s240, %s243
      %p249 = scmp.eq.s32.totalorder %s26, 0
      %p250 = por %p248, %p249
      %p251 = scmp.ne.s32.totalorder %s240, %s243
      %p252 = scmp.eq.s32.totalorder %s31, 1
      %p253 = por %p251, %p252
      %p254 = scmp.ne.s32.totalorder %s243, %s244
      %p255 = scmp.eq.s32.totalorder %s31, 0
      %p256 = por %p254, %p255
      %p257 = scmp.ne.s32.totalorder %s243, %s244
      %p258 = scmp.eq.s32.totalorder %s32, 1
      %p259 = por %p257, %p258
      %p261 = scmp.ne.s32.totalorder %s244, %s260
      %p262 = scmp.eq.s32.totalorder %s32, 0
      %p263 = por %p261, %p262
      %p264 = scmp.le.s32.totalorder 1, %s26
      %p265 = scmp.lt.s32.totalorder %s26, 3
      %p266 = pnand %p264, %p265
      %p267 = pneg %p266
      // Predicated region
      $region9: #{tpu_custom_call.1} parent=5 // pred_check
        _
      $region10: #{tpu_custom_call.1} parent=5 // pred_check_branch
        %269 = sbr.rel (%p266) target = $region12
      $region11: #{tpu_custom_call.1} parent=5 // pred_region
        %s270 = ssub.s32 %s26, 1
        // Predicated region
        $region13: #{tpu_custom_call.1} parent=11 // pred_check
          %p271 = pneg %p99
        $region14: #{tpu_custom_call.1} parent=11 // pred_check_branch
          %273 = sbr.rel (%p271) target = $region16
        $region15: #{tpu_custom_call.1} parent=11 // pred_region
          %275 = vsyncadd [#allocation6], 0
          %s276 = sshll.u32 %s2, 4
          %s277 = int_to_ptr.hbm [resolvable:$true] %s276
          %s278 = sshll.u32 [#allocation7], 4
          %s279 = int_to_ptr.vmem [resolvable:$true] %s278
          %284 = dma.hbm_to_vmem [thread:$0]  %s277, 512, %s279, [#allocation6], 128, 128, 8
        $region16: #{tpu_custom_call.1} parent=11 // pred_fallthru
          _
        // Predicated region
        $region17: #{tpu_custom_call.1} parent=11 // pred_check
          %p285 = pneg %p120
        $region18: #{tpu_custom_call.1} parent=11 // pred_check_branch
          %287 = sbr.rel (%p285) target = $region20
        $region19: #{tpu_custom_call.1} parent=11 // pred_region
          _
        $region20: #{tpu_custom_call.1} parent=11 // pred_fallthru
          _
        // Predicated region
        $region21: #{tpu_custom_call.1} parent=11 // pred_check
          %p288 = pneg %p141
        $region22: #{tpu_custom_call.1} parent=11 // pred_check_branch
          %290 = sbr.rel (%p288) target = $region24
        $region23: #{tpu_custom_call.1} parent=11 // pred_region
          %292 = vsyncadd [#allocation9], 0
          %s293 = sshll.u32 %s4, 4
          %s294 = int_to_ptr.hbm [resolvable:$true] %s293
          %s295 = sshll.u32 [#allocation8], 4
          %s296 = int_to_ptr.vmem [resolvable:$true] %s295
          %301 = dma.hbm_to_vmem [thread:$0]  %s294, 384, %s296, [#allocation9], 128, 128, 8
        $region24: #{tpu_custom_call.1} parent=11 // pred_fallthru
          _
        // Predicated region
        $region25: #{tpu_custom_call.1} parent=11 // pred_check
          %p302 = pneg %p162
        $region26: #{tpu_custom_call.1} parent=11 // pred_check_branch
          %304 = sbr.rel (%p302) target = $region28
        $region27: #{tpu_custom_call.1} parent=11 // pred_region
          _
        $region28: #{tpu_custom_call.1} parent=11 // pred_fallthru
          _
        // Predicated region
        $region29: #{tpu_custom_call.1} parent=11 // pred_check
          %p305 = pneg %p183
        $region30: #{tpu_custom_call.1} parent=11 // pred_check_branch
          %307 = sbr.rel (%p305) target = $region32
        $region31: #{tpu_custom_call.1} parent=11 // pred_region
          %309 = vsyncadd [#allocation9], 0
          %s310 = sshll.u32 %s6, 4
          %s311 = int_to_ptr.hbm [resolvable:$true] %s310
          %s312 = sshll.u32 [#allocation10], 4
          %s313 = int_to_ptr.vmem [resolvable:$true] %s312
          %318 = dma.hbm_to_vmem [thread:$0]  %s311, 512, %s313, [#allocation9], 128, 128, 8
        $region32: #{tpu_custom_call.1} parent=11 // pred_fallthru
          _
        // Predicated region
        $region33: #{tpu_custom_call.1} parent=11 // pred_check
          %p319 = pneg %p204
        $region34: #{tpu_custom_call.1} parent=11 // pred_check_branch
          %321 = sbr.rel (%p319) target = $region36
        $region35: #{tpu_custom_call.1} parent=11 // pred_region
          _
        $region36: #{tpu_custom_call.1} parent=11 // pred_fallthru
          _
      $region12: #{tpu_custom_call.1} parent=5 // pred_fallthru
        _
      %p322 = scmp.lt.s32.totalorder %s26, 2
      // Predicated region
      $region37: #{tpu_custom_call.1} parent=5 // pred_check
        %p323 = pneg %p322
      $region38: #{tpu_custom_call.1} parent=5 // pred_check_branch
        %325 = sbr.rel (%p323) target = $region40
      $region39: #{tpu_custom_call.1} parent=5 // pred_region
        // Predicated region
        $region41: #{tpu_custom_call.1} parent=39 // pred_check
          %p326 = pneg %p46
        $region42: #{tpu_custom_call.1} parent=39 // pred_check_branch
          %328 = sbr.rel (%p326) target = $region44
        $region43: #{tpu_custom_call.1} parent=39 // pred_region
          %s329 = sand.u32 %s36, 1
          %s330 = scalar_lea.sflag [#allocation3], %s329
          %s331 = sand.u32 %s36, 1
          %s332 = smul.addr %s331, 16
          %s333 = scalar_lea.vmem [#allocation2], %s332
          %335 = vsyncadd %s330, 0
          %s336 = smul.addr %s26, 2
          %s337 = smul.addr %s336, 8
          %s338 = scalar_lea.hbm %s0, %s337
          %s339 = sshll.u32 %s338, 4
          %s340 = int_to_ptr.hbm [resolvable:$true] %s339
          %s341 = sshll.u32 %s333, 4
          %s342 = int_to_ptr.vmem [resolvable:$true] %s341
          %347 = dma.hbm_to_vmem [thread:$0]  %s340, 256, %s342, %s330, 128, 128, 8
        $region44: #{tpu_custom_call.1} parent=39 // pred_fallthru
          _
        // Predicated region
        $region45: #{tpu_custom_call.1} parent=39 // pred_check
          %p348 = pneg %p72
        $region46: #{tpu_custom_call.1} parent=39 // pred_check_branch
          %350 = sbr.rel (%p348) target = $region48
        $region47: #{tpu_custom_call.1} parent=39 // pred_region
          %s351 = sand.u32 %s26, 1
          %s352 = scalar_lea.sflag [#allocation6], %s351
          %s353 = sand.u32 %s62, 1
          %s354 = smul.addr %s353, 8
          %s355 = scalar_lea.vmem [#allocation5], %s354
          %357 = vsyncadd %s352, 0
          %s358 = smul.addr %s26, 8
          %s359 = scalar_lea.hbm %s1, %s358
          %s361 = sshll.u32 %s359, 4
          %s362 = int_to_ptr.hbm [resolvable:$true] %s361
          %s363 = sshll.u32 %s355, 4
          %s364 = int_to_ptr.vmem [resolvable:$true] %s363
          %366 = dma.hbm_to_vmem [thread:$0]  %s362, 128, %s364, %s352
        $region48: #{tpu_custom_call.1} parent=39 // pred_fallthru
          _
      $region40: #{tpu_custom_call.1} parent=5 // pred_fallthru
        _
      %p367 = scmp.le.s32.totalorder 1, %s26
      %p368 = scmp.lt.s32.totalorder %s26, 3
      %p369 = pnand %p367, %p368
      %p370 = pneg %p369
      // Predicated region
      $region49: #{tpu_custom_call.1} parent=5 // pred_check
        _
      $region50: #{tpu_custom_call.1} parent=5 // pred_check_branch
        %372 = sbr.rel (%p369) target = $region52
      $region51: #{tpu_custom_call.1} parent=5 // pred_region
        %s373 = ssub.s32 %s26, 1
        %s374 = sand.u32 %s39, 1
        %s375 = scalar_lea.sflag [#allocation3], %s374
        %s376 = sand.u32 %s39, 1
        %s377 = smul.addr %s376, 16
        %s378 = scalar_lea.vmem [#allocation2], %s377
        // Predicated region
        $region53: #{tpu_custom_call.1} parent=51 // pred_check
          %p379 = pneg %p52
        $region54: #{tpu_custom_call.1} parent=51 // pred_check_branch
          %381 = sbr.rel (%p379) target = $region56
        $region55: #{tpu_custom_call.1} parent=51 // pred_region
          %383 = dma.done %s375, 256
        $region56: #{tpu_custom_call.1} parent=51 // pred_fallthru
          _
        %s384 = sand.u32 %s31, 1
        %s385 = scalar_lea.sflag [#allocation6], %s384
        %s386 = sand.u32 %s65, 1
        %s387 = smul.addr %s386, 8
        %s388 = scalar_lea.vmem [#allocation5], %s387
        // Predicated region
        $region57: #{tpu_custom_call.1} parent=51 // pred_check
          %p389 = pneg %p78
        $region58: #{tpu_custom_call.1} parent=51 // pred_check_branch
          %391 = sbr.rel (%p389) target = $region60
        $region59: #{tpu_custom_call.1} parent=51 // pred_region
          %393 = dma.done %s385, 128
        $region60: #{tpu_custom_call.1} parent=51 // pred_fallthru
          _
        // Predicated region
        $region61: #{tpu_custom_call.1} parent=51 // pred_check
          %p394 = pneg %p99
        $region62: #{tpu_custom_call.1} parent=51 // pred_check_branch
          %396 = sbr.rel (%p394) target = $region64
        $region63: #{tpu_custom_call.1} parent=51 // pred_region
          %398 = dma.done [#allocation6], 512
        $region64: #{tpu_custom_call.1} parent=51 // pred_fallthru
          _
        // Predicated region
        $region65: #{tpu_custom_call.1} parent=51 // pred_check
          %p399 = pneg %p141
        $region66: #{tpu_custom_call.1} parent=51 // pred_check_branch
          %401 = sbr.rel (%p399) target = $region68
        $region67: #{tpu_custom_call.1} parent=51 // pred_region
          %403 = dma.done [#allocation9], 384
        $region68: #{tpu_custom_call.1} parent=51 // pred_fallthru
          _
        // Predicated region
        $region69: #{tpu_custom_call.1} parent=51 // pred_check
          %p404 = pneg %p183
        $region70: #{tpu_custom_call.1} parent=51 // pred_check_branch
          %406 = sbr.rel (%p404) target = $region72
        $region71: #{tpu_custom_call.1} parent=51 // pred_region
          %408 = dma.done [#allocation9], 512
        $region72: #{tpu_custom_call.1} parent=51 // pred_fallthru
          _
        %s409 = sand.u32 %s39, 1
        %s410 = scalar_lea.sflag [#allocation3], %s409
        %s411 = sand.u32 %s39, 1
        %s412 = smul.addr %s411, 16
        %s413 = scalar_lea.vmem [#allocation2], %s412
        %p414 = pneg %p52
        %p415 = pneg %p49
        %s416 = sand.u32 %s31, 1
        %s417 = scalar_lea.sflag [#allocation6], %s416
        %s418 = sand.u32 %s65, 1
        %s419 = smul.addr %s418, 8
        %s420 = scalar_lea.vmem [#allocation5], %s419
        %p421 = pneg %p78
        %p422 = pneg %p75
        %p423 = pneg %p99
        %p424 = pneg %p96
        %p425 = pneg %p120
        %p426 = pneg %p117
        %p427 = pneg %p141
        %p428 = pneg %p138
        %p429 = pneg %p162
        %p430 = pneg %p159
        %p431 = pneg %p183
        %p432 = pneg %p180
        %p433 = pneg %p204
        %p434 = pneg %p201
        %p435 = pneg %p230
        %p436 = pneg %p227
        %s437 = sand.u32 %s217, 1
        %s438 = scalar_lea.sflag [#allocation4], %s437
        %s439 = sand.u32 %s217, 1
        %s440 = smul.addr %s439, 16
        %s441 = scalar_lea.vmem [#allocation11], %s440
        %p442 = pneg %p256
        %p443 = pneg %p253
        %p444 = scmp.lt.s32.totalorder %s31, 1
        %s445 = scalar_select %p444, %s31, 1
        %s446 = smul.addr %s445, 2
        %s447 = smul.addr %s446, 8
        %s448 = scalar_lea.vmem %s9, %s447
        %p449 = scmp.lt.s32.totalorder %s31, 1
        %s450 = scalar_select %p449, %s31, 1
        %s451 = smul.addr %s450, 2
        %s452 = smul.addr %s451, 8
        %s453 = scalar_lea.vmem %s9, %s452
        %v454 = vld [vmem:[%s378] sm:$0xff]
        %v455 = vld [vmem:[%s378 + $0x8] sm:$0xff]
        %v456 = vld [vmem:[%s388] sm:$0xff]
        %v457 = vld [vmem:[#allocation7] sm:$0xff]
        %v458 = vld [vmem:[#allocation7 + $0x8] sm:$0xff]
        %v459 = vld [vmem:[#allocation7 + $0x10] sm:$0xff]
        %v460 = vld [vmem:[#allocation7 + $0x18] sm:$0xff]
        %v461 = vld [vmem:[%s3] sm:$0x1]
        %v463 = vperm.slane %v461, 0
        %vm465 = vcmask 261120
        %v467 = vsel %vm465, %v454, 0
        %v470 = vsel %vm465, %v455, 0
        %472 = vmatpush.msra.mxu0 0.0
        %473 = vmatpush.msra.mxu0 0.0
        %474 = vmatpush.msra.mxu0 0.0
        %475 = vmatpush.msra.mxu0 0.0
        %476 = vmatpush.msra.mxu0 0.0
        %477 = vmatpush.msra.mxu0 0.0
        %478 = vmatpush.msra.mxu0 0.0
        %479 = vmatpush.msra.mxu0 0.0
        %480 = vmatpush.msra.mxu0 0.0
        %481 = vmatpush.msra.mxu0 0.0
        %482 = vmatpush.msra.mxu0 0.0
        %483 = vmatpush.msra.mxu0 0.0
        %484 = vmatpush.msra.mxu0 %v460
        %485 = vmatpush.msra.mxu0 %v459
        %486 = vmatpush.msra.mxu0 %v458
        %487 = vmatpush.msra.mxu0 %v457
        %488 = vmatmul.f32.gmra.mxu0 %v467
        %v489 = vpop.f32.mrf.mxu0
        %v490 = vadd.f32 %v463, %v489
        %491 = vmatmul.f32.gmra.mxu0 %v470
        %v492 = vpop.f32.mrf.mxu0
        %v493 = vadd.f32 %v463, %v492
        %494 = vdwg.mxu0
        %v495 = vld [vmem:[#allocation8] sm:$0xff]
        %v496 = vld [vmem:[#allocation8 + $0x8] sm:$0xff]
        %v497 = vld [vmem:[#allocation8 + $0x10] sm:$0xff]
        %v498 = vld [vmem:[%s5] sm:$0x1]
        %v500 = vperm.slane %v498, 0
        %vm502 = vcmask 195584
        %v504 = vsel %vm502, %v456, 0
        %506 = vmatpush.msra.mxu0 0.0
        %507 = vmatpush.msra.mxu0 0.0
        %508 = vmatpush.msra.mxu0 0.0
        %509 = vmatpush.msra.mxu0 0.0
        %510 = vmatpush.msra.mxu0 0.0
        %511 = vmatpush.msra.mxu0 0.0
        %512 = vmatpush.msra.mxu0 0.0
        %513 = vmatpush.msra.mxu0 0.0
        %514 = vmatpush.msra.mxu0 0.0
        %515 = vmatpush.msra.mxu0 0.0
        %516 = vmatpush.msra.mxu0 0.0
        %517 = vmatpush.msra.mxu0 0.0
        %518 = vmatpush.msra.mxu0 0.0
        %519 = vmatpush.msra.mxu0 %v497
        %520 = vmatpush.msra.mxu0 %v496
        %521 = vmatpush.msra.mxu0 %v495
        %522 = vmatmul.f32.gmra.mxu0 %v504
        %v523 = vpop.f32.mrf.mxu0
        %v524 = vadd.f32 %v500, %v523
        %525 = vdwg.mxu0
        %v526 = vld [vmem:[#allocation10] sm:$0xff]
        %v527 = vld [vmem:[#allocation10 + $0x8] sm:$0xff]
        %v528 = vld [vmem:[#allocation10 + $0x10] sm:$0xff]
        %v529 = vld [vmem:[#allocation10 + $0x18] sm:$0xff]
        %vm530 = vcmask 64512
        %v532 = vsel %vm530, %v490, 0
        %v535 = vsel %vm530, %v493, 0
        %v538 = vsel %vm530, %v524, 0
        %540 = vmatpush.xpose.msra.mxu0 0.0
        %541 = vmatpush.xpose.msra.mxu0 0.0
        %542 = vmatpush.xpose.msra.mxu0 0.0
        %543 = vmatpush.xpose.msra.mxu0 0.0
        %544 = vmatpush.xpose.msra.mxu0 0.0
        %545 = vmatpush.xpose.msra.mxu0 0.0
        %546 = vmatpush.xpose.msra.mxu0 0.0
        %547 = vmatpush.xpose.msra.mxu0 0.0
        %548 = vmatpush.xpose.msra.mxu0 0.0
        %549 = vmatpush.xpose.msra.mxu0 0.0
        %550 = vmatpush.xpose.msra.mxu0 0.0
        %551 = vmatpush.xpose.msra.mxu0 0.0
        %552 = vmatpush.xpose.msra.mxu0 0.0
        %553 = vmatpush.xpose.msra.mxu0 0.0
        %554 = vmatpush.xpose.msra.mxu0 0.0
        %555 = vmatpush.xpose.msra.mxu0 %v538
        %556 = vmatmul.f32.gmra.mxu0 %v532
        %v557 = vpop.f32.mrf.mxu0
        %v558 = vadd.f32 0.0, %v557
        %559 = vmatmul.f32.gmra.mxu0 %v535
        %v560 = vpop.f32.mrf.mxu0
        %v561 = vadd.f32 0.0, %v560
        %562 = vdwg.mxu0
        %v563 = vsel %vm530, %v558, -inf
        %564 = vmax.xlane.f32.xlu0 %v563
        %v565 = vpop.xlane.xlu0 %564
        %v566 = vsel %vm530, %v561, -inf
        %567 = vmax.xlane.f32.xlu0 %v566
        %v568 = vpop.xlane.xlu0 %567
        %v569 = vsub.f32 %v558, %v565
        %v570 = vsub.f32 %v561, %v568
        %v571 = vmul.f32 %v569, 1.442695
        %v572 = vpow.pop %v571
        %v573 = vmul.f32 %v570, 1.442695
        %v574 = vpow.pop %v573
        %v575 = vsel %vm530, %v572, 0.0
        %576 = vadd.xlane.f32.xlu0 %v575
        %v577 = vpop.xlane.xlu0 %576
        %v578 = vsel %vm530, %v574, 0.0
        %579 = vadd.xlane.f32.xlu0 %v578
        %v580 = vpop.xlane.xlu0 %579
        %v581 = vrcp.pop %v577
        %v582 = vmul.f32 %v577, %v581
        %v583 = vsub.f32 1.0, %v582
        %v584 = vmul.f32 %v581, %v583
        %v585 = vadd.f32 %v581, %v584
        %vm586 = vweird.f32 %v577
        %vm587 = vweird.f32 %v581
        %vm588 = vmor %vm586, %vm587
        %v589 = vsel %vm588, %v581, %v585
        %v590 = vand.u32 2147483647, %v577
        %vm591 = vcmp.eq.f32.partialorder %v590, 8.507059e+37
        %v592 = vand.u32 %v577, 2147483648
        %v593 = vor.u32 1.1754944e-38, %v592
        %v594 = vsel %vm591, %v593, %v589
        %v595 = vrcp.pop %v580
        %v596 = vmul.f32 %v580, %v595
        %v597 = vsub.f32 1.0, %v596
        %v598 = vmul.f32 %v595, %v597
        %v599 = vadd.f32 %v595, %v598
        %vm600 = vweird.f32 %v580
        %vm601 = vweird.f32 %v595
        %vm602 = vmor %vm600, %vm601
        %v603 = vsel %vm602, %v595, %v599
        %v604 = vand.u32 2147483647, %v580
        %vm605 = vcmp.eq.f32.partialorder %v604, 8.507059e+37
        %v606 = vand.u32 %v580, 2147483648
        %v607 = vor.u32 1.1754944e-38, %v606
        %v608 = vsel %vm605, %v607, %v603
        %v609 = vmul.f32 %v572, %v594
        %v610 = vmul.f32 %v574, %v608
        %v611 = vadd.f32 %v609, 0.0
        %v612 = vadd.f32 %v610, 0.0
        %613 = vrot.lane.b32.xlu0 %v524, 96
        %v614 = vpop.permute.xlu0 %613
        %v617 = vsel %vm530, %v609, 0
        %v620 = vsel %vm530, %v610, 0
        %622 = vmatpush.msra.mxu0 0.0
        %623 = vmatpush.msra.mxu0 0.0
        %624 = vmatpush.msra.mxu0 0.0
        %625 = vmatpush.msra.mxu0 0.0
        %626 = vmatpush.msra.mxu0 0.0
        %627 = vmatpush.msra.mxu0 0.0
        %628 = vmatpush.msra.mxu0 0.0
        %629 = vmatpush.msra.mxu0 0.0
        %630 = vmatpush.msra.mxu0 0.0
        %631 = vmatpush.msra.mxu0 0.0
        %632 = vmatpush.msra.mxu0 0.0
        %633 = vmatpush.msra.mxu0 0.0
        %634 = vmatpush.msra.mxu0 0.0
        %635 = vmatpush.msra.mxu0 0.0
        %636 = vmatpush.msra.mxu0 0.0
        %637 = vmatpush.msra.mxu0 %v614
        %638 = vmatmul.f32.gmra.mxu0 %v617
        %v639 = vpop.f32.mrf.mxu0
        %v640 = vadd.f32 0.0, %v639
        %641 = vmatmul.f32.gmra.mxu0 %v620
        %v642 = vpop.f32.mrf.mxu0
        %v643 = vadd.f32 0.0, %v642
        %644 = vdwg.mxu0
        %645 = vrot.lane.b32.xlu0 %v490, 120
        %v646 = vpop.permute.xlu0 %645
        %647 = vrot.lane.b32.xlu0 %v493, 120
        %v648 = vpop.permute.xlu0 %647
        %649 = vrot.lane.b32.xlu0 %v524, 120
        %v650 = vpop.permute.xlu0 %649
        %v651 = vsel %vm530, %v646, 0
        %v653 = vsel %vm530, %v648, 0
        %v655 = vsel %vm530, %v650, 0
        %657 = vmatpush.xpose.msra.mxu0 0.0
        %658 = vmatpush.xpose.msra.mxu0 0.0
        %659 = vmatpush.xpose.msra.mxu0 0.0
        %660 = vmatpush.xpose.msra.mxu0 0.0
        %661 = vmatpush.xpose.msra.mxu0 0.0
        %662 = vmatpush.xpose.msra.mxu0 0.0
        %663 = vmatpush.xpose.msra.mxu0 0.0
        %664 = vmatpush.xpose.msra.mxu0 0.0
        %665 = vmatpush.xpose.msra.mxu0 0.0
        %666 = vmatpush.xpose.msra.mxu0 0.0
        %667 = vmatpush.xpose.msra.mxu0 0.0
        %668 = vmatpush.xpose.msra.mxu0 0.0
        %669 = vmatpush.xpose.msra.mxu0 0.0
        %670 = vmatpush.xpose.msra.mxu0 0.0
        %671 = vmatpush.xpose.msra.mxu0 0.0
        %672 = vmatpush.xpose.msra.mxu0 %v655
        %673 = vmatmul.f32.gmra.mxu0 %v651
        %v674 = vpop.f32.mrf.mxu0
        %v675 = vadd.f32 0.0, %v674
        %676 = vmatmul.f32.gmra.mxu0 %v653
        %v677 = vpop.f32.mrf.mxu0
        %v678 = vadd.f32 0.0, %v677
        %679 = vdwg.mxu0
        %v680 = vsel %vm530, %v675, -inf
        %681 = vmax.xlane.f32.xlu0 %v680
        %v682 = vpop.xlane.xlu0 %681
        %v683 = vsel %vm530, %v678, -inf
        %684 = vmax.xlane.f32.xlu0 %v683
        %v685 = vpop.xlane.xlu0 %684
        %v686 = vsub.f32 %v675, %v682
        %v687 = vsub.f32 %v678, %v685
        %v688 = vmul.f32 %v686, 1.442695
        %v689 = vpow.pop %v688
        %v690 = vmul.f32 %v687, 1.442695
        %v691 = vpow.pop %v690
        %v692 = vsel %vm530, %v689, 0.0
        %693 = vadd.xlane.f32.xlu0 %v692
        %v694 = vpop.xlane.xlu0 %693
        %v695 = vsel %vm530, %v691, 0.0
        %696 = vadd.xlane.f32.xlu0 %v695
        %v697 = vpop.xlane.xlu0 %696
        %v698 = vrcp.pop %v694
        %v699 = vmul.f32 %v694, %v698
        %v700 = vsub.f32 1.0, %v699
        %v701 = vmul.f32 %v698, %v700
        %v702 = vadd.f32 %v698, %v701
        %vm703 = vweird.f32 %v694
        %vm704 = vweird.f32 %v698
        %vm705 = vmor %vm703, %vm704
        %v706 = vsel %vm705, %v698, %v702
        %v707 = vand.u32 2147483647, %v694
        %vm708 = vcmp.eq.f32.partialorder %v707, 8.507059e+37
        %v709 = vand.u32 %v694, 2147483648
        %v710 = vor.u32 1.1754944e-38, %v709
        %v711 = vsel %vm708, %v710, %v706
        %v712 = vrcp.pop %v697
        %v713 = vmul.f32 %v697, %v712
        %v714 = vsub.f32 1.0, %v713
        %v715 = vmul.f32 %v712, %v714
        %v716 = vadd.f32 %v712, %v715
        %vm717 = vweird.f32 %v697
        %vm718 = vweird.f32 %v712
        %vm719 = vmor %vm717, %vm718
        %v720 = vsel %vm719, %v712, %v716
        %v721 = vand.u32 2147483647, %v697
        %vm722 = vcmp.eq.f32.partialorder %v721, 8.507059e+37
        %v723 = vand.u32 %v697, 2147483648
        %v724 = vor.u32 1.1754944e-38, %v723
        %v725 = vsel %vm722, %v724, %v720
        %v726 = vmul.f32 %v689, %v711
        %v727 = vmul.f32 %v691, %v725
        %v728 = vadd.f32 %v611, %v726
        %v729 = vadd.f32 %v612, %v727
        %730 = vrot.lane.b32.xlu0 %v524, 88
        %v731 = vpop.permute.xlu0 %730
        %v734 = vsel %vm530, %v726, 0
        %v737 = vsel %vm530, %v727, 0
        %739 = vmatpush.msra.mxu0 0.0
        %740 = vmatpush.msra.mxu0 0.0
        %741 = vmatpush.msra.mxu0 0.0
        %742 = vmatpush.msra.mxu0 0.0
        %743 = vmatpush.msra.mxu0 0.0
        %744 = vmatpush.msra.mxu0 0.0
        %745 = vmatpush.msra.mxu0 0.0
        %746 = vmatpush.msra.mxu0 0.0
        %747 = vmatpush.msra.mxu0 0.0
        %748 = vmatpush.msra.mxu0 0.0
        %749 = vmatpush.msra.mxu0 0.0
        %750 = vmatpush.msra.mxu0 0.0
        %751 = vmatpush.msra.mxu0 0.0
        %752 = vmatpush.msra.mxu0 0.0
        %753 = vmatpush.msra.mxu0 0.0
        %754 = vmatpush.msra.mxu0 %v731
        %755 = vmatmul.f32.gmra.mxu0 %v734
        %v756 = vpop.f32.mrf.mxu0
        %v757 = vadd.f32 0.0, %v756
        %758 = vmatmul.f32.gmra.mxu0 %v737
        %v759 = vpop.f32.mrf.mxu0
        %v760 = vadd.f32 0.0, %v759
        %761 = vdwg.mxu0
        %v763 = vsel %vm530, %v757, 0
        %v766 = vsel %vm530, %v760, 0
        %768 = vmatpush.msra.mxu0 0.0
        %769 = vmatpush.msra.mxu0 0.0
        %770 = vmatpush.msra.mxu0 0.0
        %771 = vmatpush.msra.mxu0 0.0
        %772 = vmatpush.msra.mxu0 0.0
        %773 = vmatpush.msra.mxu0 0.0
        %774 = vmatpush.msra.mxu0 0.0
        %775 = vmatpush.msra.mxu0 0.0
        %776 = vmatpush.msra.mxu0 0.0
        %777 = vmatpush.msra.mxu0 0.0
        %778 = vmatpush.msra.mxu0 0.0
        %779 = vmatpush.msra.mxu0 0.0
        %780 = vmatpush.msra.mxu0 0.0
        %781 = vmatpush.msra.mxu0 0.0
        %782 = vmatpush.msra.mxu0 0.0
        %783 = vmatpush.msra.mxu0 %v527
        %784 = vmatmul.f32.gmra.mxu0 %v763
        %v785 = vpop.f32.mrf.mxu0
        %v786 = vadd.f32 0.0, %v785
        %787 = vmatmul.f32.gmra.mxu0 %v766
        %v788 = vpop.f32.mrf.mxu0
        %v789 = vadd.f32 0.0, %v788
        %790 = vdwg.mxu0
        %v792 = vsel %vm530, %v640, 0
        %v795 = vsel %vm530, %v643, 0
        %797 = vmatpush.msra.mxu0 0.0
        %798 = vmatpush.msra.mxu0 0.0
        %799 = vmatpush.msra.mxu0 0.0
        %800 = vmatpush.msra.mxu0 0.0
        %801 = vmatpush.msra.mxu0 0.0
        %802 = vmatpush.msra.mxu0 0.0
        %803 = vmatpush.msra.mxu0 0.0
        %804 = vmatpush.msra.mxu0 0.0
        %805 = vmatpush.msra.mxu0 0.0
        %806 = vmatpush.msra.mxu0 0.0
        %807 = vmatpush.msra.mxu0 0.0
        %808 = vmatpush.msra.mxu0 0.0
        %809 = vmatpush.msra.mxu0 0.0
        %810 = vmatpush.msra.mxu0 0.0
        %811 = vmatpush.msra.mxu0 0.0
        %812 = vmatpush.msra.mxu0 %v526
        %813 = vmatmul.f32.gmra.mxu0 %v792
        %v814 = vpop.f32.mrf.mxu0
        %v815 = vadd.f32 %v786, %v814
        %816 = vmatmul.f32.gmra.mxu0 %v795
        %v817 = vpop.f32.mrf.mxu0
        %v818 = vadd.f32 %v789, %v817
        %819 = vdwg.mxu0
        %820 = vrot.lane.b32.xlu0 %v490, 112
        %v821 = vpop.permute.xlu0 %820
        %822 = vrot.lane.b32.xlu0 %v493, 112
        %v823 = vpop.permute.xlu0 %822
        %824 = vrot.lane.b32.xlu0 %v524, 112
        %v825 = vpop.permute.xlu0 %824
        %v826 = vsel %vm530, %v821, 0
        %v828 = vsel %vm530, %v823, 0
        %v830 = vsel %vm530, %v825, 0
        %832 = vmatpush.xpose.msra.mxu0 0.0
        %833 = vmatpush.xpose.msra.mxu0 0.0
        %834 = vmatpush.xpose.msra.mxu0 0.0
        %835 = vmatpush.xpose.msra.mxu0 0.0
        %836 = vmatpush.xpose.msra.mxu0 0.0
        %837 = vmatpush.xpose.msra.mxu0 0.0
        %838 = vmatpush.xpose.msra.mxu0 0.0
        %839 = vmatpush.xpose.msra.mxu0 0.0
        %840 = vmatpush.xpose.msra.mxu0 0.0
        %841 = vmatpush.xpose.msra.mxu0 0.0
        %842 = vmatpush.xpose.msra.mxu0 0.0
        %843 = vmatpush.xpose.msra.mxu0 0.0
        %844 = vmatpush.xpose.msra.mxu0 0.0
        %845 = vmatpush.xpose.msra.mxu0 0.0
        %846 = vmatpush.xpose.msra.mxu0 0.0
        %847 = vmatpush.xpose.msra.mxu0 %v830
        %848 = vmatmul.f32.gmra.mxu0 %v826
        %v849 = vpop.f32.mrf.mxu0
        %v850 = vadd.f32 0.0, %v849
        %851 = vmatmul.f32.gmra.mxu0 %v828
        %v852 = vpop.f32.mrf.mxu0
        %v853 = vadd.f32 0.0, %v852
        %854 = vdwg.mxu0
        %v855 = vsel %vm530, %v850, -inf
        %856 = vmax.xlane.f32.xlu0 %v855
        %v857 = vpop.xlane.xlu0 %856
        %v858 = vsel %vm530, %v853, -inf
        %859 = vmax.xlane.f32.xlu0 %v858
        %v860 = vpop.xlane.xlu0 %859
        %v861 = vsub.f32 %v850, %v857
        %v862 = vsub.f32 %v853, %v860
        %v863 = vmul.f32 %v861, 1.442695
        %v864 = vpow.pop %v863
        %v865 = vmul.f32 %v862, 1.442695
        %v866 = vpow.pop %v865
        %v867 = vsel %vm530, %v864, 0.0
        %868 = vadd.xlane.f32.xlu0 %v867
        %v869 = vpop.xlane.xlu0 %868
        %v870 = vsel %vm530, %v866, 0.0
        %871 = vadd.xlane.f32.xlu0 %v870
        %v872 = vpop.xlane.xlu0 %871
        %v873 = vrcp.pop %v869
        %v874 = vmul.f32 %v869, %v873
        %v875 = vsub.f32 1.0, %v874
        %v876 = vmul.f32 %v873, %v875
        %v877 = vadd.f32 %v873, %v876
        %vm878 = vweird.f32 %v869
        %vm879 = vweird.f32 %v873
        %vm880 = vmor %vm878, %vm879
        %v881 = vsel %vm880, %v873, %v877
        %v882 = vand.u32 2147483647, %v869
        %vm883 = vcmp.eq.f32.partialorder %v882, 8.507059e+37
        %v884 = vand.u32 %v869, 2147483648
        %v885 = vor.u32 1.1754944e-38, %v884
        %v886 = vsel %vm883, %v885, %v881
        %v887 = vrcp.pop %v872
        %v888 = vmul.f32 %v872, %v887
        %v889 = vsub.f32 1.0, %v888
        %v890 = vmul.f32 %v887, %v889
        %v891 = vadd.f32 %v887, %v890
        %vm892 = vweird.f32 %v872
        %vm893 = vweird.f32 %v887
        %vm894 = vmor %vm892, %vm893
        %v895 = vsel %vm894, %v887, %v891
        %v896 = vand.u32 2147483647, %v872
        %vm897 = vcmp.eq.f32.partialorder %v896, 8.507059e+37
        %v898 = vand.u32 %v872, 2147483648
        %v899 = vor.u32 1.1754944e-38, %v898
        %v900 = vsel %vm897, %v899, %v895
        %v901 = vmul.f32 %v864, %v886
        %v902 = vmul.f32 %v866, %v900
        %v903 = vadd.f32 %v728, %v901
        %v904 = vadd.f32 %v729, %v902
        %905 = vrot.lane.b32.xlu0 %v524, 80
        %v906 = vpop.permute.xlu0 %905
        %v909 = vsel %vm530, %v901, 0
        %v912 = vsel %vm530, %v902, 0
        %914 = vmatpush.msra.mxu0 0.0
        %915 = vmatpush.msra.mxu0 0.0
        %916 = vmatpush.msra.mxu0 0.0
        %917 = vmatpush.msra.mxu0 0.0
        %918 = vmatpush.msra.mxu0 0.0
        %919 = vmatpush.msra.mxu0 0.0
        %920 = vmatpush.msra.mxu0 0.0
        %921 = vmatpush.msra.mxu0 0.0
        %922 = vmatpush.msra.mxu0 0.0
        %923 = vmatpush.msra.mxu0 0.0
        %924 = vmatpush.msra.mxu0 0.0
        %925 = vmatpush.msra.mxu0 0.0
        %926 = vmatpush.msra.mxu0 0.0
        %927 = vmatpush.msra.mxu0 0.0
        %928 = vmatpush.msra.mxu0 0.0
        %929 = vmatpush.msra.mxu0 %v906
        %930 = vmatmul.f32.gmra.mxu0 %v909
        %v931 = vpop.f32.mrf.mxu0
        %v932 = vadd.f32 0.0, %v931
        %933 = vmatmul.f32.gmra.mxu0 %v912
        %v934 = vpop.f32.mrf.mxu0
        %v935 = vadd.f32 0.0, %v934
        %936 = vdwg.mxu0
        %v938 = vsel %vm530, %v932, 0
        %v941 = vsel %vm530, %v935, 0
        %943 = vmatpush.msra.mxu0 0.0
        %944 = vmatpush.msra.mxu0 0.0
        %945 = vmatpush.msra.mxu0 0.0
        %946 = vmatpush.msra.mxu0 0.0
        %947 = vmatpush.msra.mxu0 0.0
        %948 = vmatpush.msra.mxu0 0.0
        %949 = vmatpush.msra.mxu0 0.0
        %950 = vmatpush.msra.mxu0 0.0
        %951 = vmatpush.msra.mxu0 0.0
        %952 = vmatpush.msra.mxu0 0.0
        %953 = vmatpush.msra.mxu0 0.0
        %954 = vmatpush.msra.mxu0 0.0
        %955 = vmatpush.msra.mxu0 0.0
        %956 = vmatpush.msra.mxu0 0.0
        %957 = vmatpush.msra.mxu0 0.0
        %958 = vmatpush.msra.mxu0 %v528
        %959 = vmatmul.f32.gmra.mxu0 %v938
        %v960 = vpop.f32.mrf.mxu0
        %v961 = vadd.f32 0.0, %v960
        %962 = vmatmul.f32.gmra.mxu0 %v941
        %v963 = vpop.f32.mrf.mxu0
        %v964 = vadd.f32 0.0, %v963
        %965 = vdwg.mxu0
        %v966 = vadd.f32 %v815, %v961
        %v967 = vadd.f32 %v818, %v964
        %968 = vrot.lane.b32.xlu0 %v490, 104
        %v969 = vpop.permute.xlu0 %968
        %970 = vrot.lane.b32.xlu0 %v493, 104
        %v971 = vpop.permute.xlu0 %970
        %972 = vrot.lane.b32.xlu0 %v524, 104
        %v973 = vpop.permute.xlu0 %972
        %v974 = vsel %vm530, %v969, 0
        %v976 = vsel %vm530, %v971, 0
        %v978 = vsel %vm530, %v973, 0
        %980 = vmatpush.xpose.msra.mxu0 0.0
        %981 = vmatpush.xpose.msra.mxu0 0.0
        %982 = vmatpush.xpose.msra.mxu0 0.0
        %983 = vmatpush.xpose.msra.mxu0 0.0
        %984 = vmatpush.xpose.msra.mxu0 0.0
        %985 = vmatpush.xpose.msra.mxu0 0.0
        %986 = vmatpush.xpose.msra.mxu0 0.0
        %987 = vmatpush.xpose.msra.mxu0 0.0
        %988 = vmatpush.xpose.msra.mxu0 0.0
        %989 = vmatpush.xpose.msra.mxu0 0.0
        %990 = vmatpush.xpose.msra.mxu0 0.0
        %991 = vmatpush.xpose.msra.mxu0 0.0
        %992 = vmatpush.xpose.msra.mxu0 0.0
        %993 = vmatpush.xpose.msra.mxu0 0.0
        %994 = vmatpush.xpose.msra.mxu0 0.0
        %995 = vmatpush.xpose.msra.mxu0 %v978
        %996 = vmatmul.f32.gmra.mxu0 %v974
        %v997 = vpop.f32.mrf.mxu0
        %v998 = vadd.f32 0.0, %v997
        %999 = vmatmul.f32.gmra.mxu0 %v976
        %v1000 = vpop.f32.mrf.mxu0
        %v1001 = vadd.f32 0.0, %v1000
        %1002 = vdwg.mxu0
        %v1003 = vsel %vm530, %v998, -inf
        %1004 = vmax.xlane.f32.xlu0 %v1003
        %v1005 = vpop.xlane.xlu0 %1004
        %v1006 = vsel %vm530, %v1001, -inf
        %1007 = vmax.xlane.f32.xlu0 %v1006
        %v1008 = vpop.xlane.xlu0 %1007
        %v1009 = vsub.f32 %v998, %v1005
        %v1010 = vsub.f32 %v1001, %v1008
        %v1011 = vmul.f32 %v1009, 1.442695
        %v1012 = vpow.pop %v1011
        %v1013 = vmul.f32 %v1010, 1.442695
        %v1014 = vpow.pop %v1013
        %v1015 = vsel %vm530, %v1012, 0.0
        %1016 = vadd.xlane.f32.xlu0 %v1015
        %v1017 = vpop.xlane.xlu0 %1016
        %v1018 = vsel %vm530, %v1014, 0.0
        %1019 = vadd.xlane.f32.xlu0 %v1018
        %v1020 = vpop.xlane.xlu0 %1019
        %v1021 = vrcp.pop %v1017
        %v1022 = vmul.f32 %v1017, %v1021
        %v1023 = vsub.f32 1.0, %v1022
        %v1024 = vmul.f32 %v1021, %v1023
        %v1025 = vadd.f32 %v1021, %v1024
        %vm1026 = vweird.f32 %v1017
        %vm1027 = vweird.f32 %v1021
        %vm1028 = vmor %vm1026, %vm1027
        %v1029 = vsel %vm1028, %v1021, %v1025
        %v1030 = vand.u32 2147483647, %v1017
        %vm1031 = vcmp.eq.f32.partialorder %v1030, 8.507059e+37
        %v1032 = vand.u32 %v1017, 2147483648
        %v1033 = vor.u32 1.1754944e-38, %v1032
        %v1034 = vsel %vm1031, %v1033, %v1029
        %v1035 = vrcp.pop %v1020
        %v1036 = vmul.f32 %v1020, %v1035
        %v1037 = vsub.f32 1.0, %v1036
        %v1038 = vmul.f32 %v1035, %v1037
        %v1039 = vadd.f32 %v1035, %v1038
        %vm1040 = vweird.f32 %v1020
        %vm1041 = vweird.f32 %v1035
        %vm1042 = vmor %vm1040, %vm1041
        %v1043 = vsel %vm1042, %v1035, %v1039
        %v1044 = vand.u32 2147483647, %v1020
        %vm1045 = vcmp.eq.f32.partialorder %v1044, 8.507059e+37
        %v1046 = vand.u32 %v1020, 2147483648
        %v1047 = vor.u32 1.1754944e-38, %v1046
        %v1048 = vsel %vm1045, %v1047, %v1043
        %v1049 = vmul.f32 %v1012, %v1034
        %v1050 = vmul.f32 %v1014, %v1048
        %v1051 = vadd.f32 %v903, %v1049
        %v1052 = vadd.f32 %v904, %v1050
        %1053 = vrot.lane.b32.xlu0 %v524, 72
        %v1054 = vpop.permute.xlu0 %1053
        %v1057 = vsel %vm530, %v1049, 0
        %v1060 = vsel %vm530, %v1050, 0
        %1062 = vmatpush.msra.mxu0 0.0
        %1063 = vmatpush.msra.mxu0 0.0
        %1064 = vmatpush.msra.mxu0 0.0
        %1065 = vmatpush.msra.mxu0 0.0
        %1066 = vmatpush.msra.mxu0 0.0
        %1067 = vmatpush.msra.mxu0 0.0
        %1068 = vmatpush.msra.mxu0 0.0
        %1069 = vmatpush.msra.mxu0 0.0
        %1070 = vmatpush.msra.mxu0 0.0
        %1071 = vmatpush.msra.mxu0 0.0
        %1072 = vmatpush.msra.mxu0 0.0
        %1073 = vmatpush.msra.mxu0 0.0
        %1074 = vmatpush.msra.mxu0 0.0
        %1075 = vmatpush.msra.mxu0 0.0
        %1076 = vmatpush.msra.mxu0 0.0
        %1077 = vmatpush.msra.mxu0 %v1054
        %1078 = vmatmul.f32.gmra.mxu0 %v1057
        %v1079 = vpop.f32.mrf.mxu0
        %v1080 = vadd.f32 0.0, %v1079
        %1081 = vmatmul.f32.gmra.mxu0 %v1060
        %v1082 = vpop.f32.mrf.mxu0
        %v1083 = vadd.f32 0.0, %v1082
        %1084 = vdwg.mxu0
        %v1086 = vsel %vm530, %v1080, 0
        %v1089 = vsel %vm530, %v1083, 0
        %1091 = vmatpush.msra.mxu0 0.0
        %1092 = vmatpush.msra.mxu0 0.0
        %1093 = vmatpush.msra.mxu0 0.0
        %1094 = vmatpush.msra.mxu0 0.0
        %1095 = vmatpush.msra.mxu0 0.0
        %1096 = vmatpush.msra.mxu0 0.0
        %1097 = vmatpush.msra.mxu0 0.0
        %1098 = vmatpush.msra.mxu0 0.0
        %1099 = vmatpush.msra.mxu0 0.0
        %1100 = vmatpush.msra.mxu0 0.0
        %1101 = vmatpush.msra.mxu0 0.0
        %1102 = vmatpush.msra.mxu0 0.0
        %1103 = vmatpush.msra.mxu0 0.0
        %1104 = vmatpush.msra.mxu0 0.0
        %1105 = vmatpush.msra.mxu0 0.0
        %1106 = vmatpush.msra.mxu0 %v529
        %1107 = vmatmul.f32.gmra.mxu0 %v1086
        %v1108 = vpop.f32.mrf.mxu0
        %v1109 = vadd.f32 0.0, %v1108
        %1110 = vmatmul.f32.gmra.mxu0 %v1089
        %v1111 = vpop.f32.mrf.mxu0
        %v1112 = vadd.f32 0.0, %v1111
        %1113 = vdwg.mxu0
        %v1114 = vadd.f32 %v966, %v1109
        %v1115 = vadd.f32 %v967, %v1112
        %v1116 = vld [vmem:[%s7] sm:$0x1]
        %v1118 = vperm.slane %v1116, 0
        %v1120 = vadd.f32 %v1114, %v1118
        %v1121 = vadd.f32 %v1115, %v1118
        %1122 = vst.msk [vmem:[%s441] sm:$0xff] %vm465, %v1120
        %1123 = vst.msk [vmem:[%s441 + $0x8] sm:$0xff] %vm465, %v1121
        %v1124 = vmul.f32 %v1051, 0.25
        %v1125 = vmul.f32 %v1052, 0.25
        %1126 = vst.msk [vmem:[%s453] sm:$0xff] %vm530, %v1124
        %1127 = vst.msk [vmem:[%s453 + $0x8] sm:$0xff] %vm530, %v1125
        %s1128 = sand.u32 %s217, 1
        %s1129 = scalar_lea.sflag [#allocation4], %s1128
        %s1130 = sand.u32 %s217, 1
        %s1131 = smul.addr %s1130, 16
        %s1132 = scalar_lea.vmem [#allocation11], %s1131
        %p1133 = scmp.lt.s32.totalorder %s31, 1
        %s1134 = scalar_select %p1133, %s31, 1
        %s1135 = smul.addr %s1134, 2
        %s1136 = smul.addr %s1135, 8
        %s1137 = scalar_lea.vmem %s9, %s1136
        // Predicated region
        $region73: #{tpu_custom_call.1} parent=51 // pred_check
          %p1138 = pneg %p227
        $region74: #{tpu_custom_call.1} parent=51 // pred_check_branch
          %1140 = sbr.rel (%p1138) target = $region76
        $region75: #{tpu_custom_call.1} parent=51 // pred_region
          %1142 = vsyncadd %s1129, 0
          %s1143 = smul.addr %s31, 2
          %s1144 = smul.addr %s1143, 8
          %s1145 = scalar_lea.hbm %s8, %s1144
          %s1146 = sshll.u32 %s1132, 4
          %s1147 = int_to_ptr.vmem [resolvable:$true] %s1146
          %s1148 = sshll.u32 %s1145, 4
          %s1149 = int_to_ptr.hbm [resolvable:$true] %s1148
          %1154 = dma.vmem_to_hbm [thread:$0]  %s1147, 256, %s1149, %s1129, 128, 128, 8
        $region76: #{tpu_custom_call.1} parent=51 // pred_fallthru
          _
        // Predicated region
        $region77: #{tpu_custom_call.1} parent=51 // pred_check
          %p1155 = pneg %p253
        $region78: #{tpu_custom_call.1} parent=51 // pred_check_branch
          %1157 = sbr.rel (%p1155) target = $region80
        $region79: #{tpu_custom_call.1} parent=51 // pred_region
          _
        $region80: #{tpu_custom_call.1} parent=51 // pred_fallthru
          _
      $region52: #{tpu_custom_call.1} parent=5 // pred_fallthru
        _
      %p1158 = scmp.le.s32.totalorder 2, %s26
      // Predicated region
      $region81: #{tpu_custom_call.1} parent=5 // pred_check
        %p1159 = pneg %p1158
      $region82: #{tpu_custom_call.1} parent=5 // pred_check_branch
        %1161 = sbr.rel (%p1159) target = $region84
      $region83: #{tpu_custom_call.1} parent=5 // pred_region
        %s1162 = ssub.s32 %s26, 2
        // Predicated region
        $region85: #{tpu_custom_call.1} parent=83 // pred_check
          %p1163 = pneg %p233
        $region86: #{tpu_custom_call.1} parent=83 // pred_check_branch
          %1165 = sbr.rel (%p1163) target = $region88
        $region87: #{tpu_custom_call.1} parent=83 // pred_region
          %s1166 = sand.u32 %s218, 1
          %s1167 = scalar_lea.sflag [#allocation4], %s1166
          %s1168 = sand.u32 %s218, 1
          %s1169 = smul.addr %s1168, 16
          %s1170 = scalar_lea.vmem [#allocation11], %s1169
          %1172 = dma.done %s1167, 256
        $region88: #{tpu_custom_call.1} parent=83 // pred_fallthru
          _
        // Predicated region
        $region89: #{tpu_custom_call.1} parent=83 // pred_check
          %p1173 = pneg %p259
        $region90: #{tpu_custom_call.1} parent=83 // pred_check_branch
          %1175 = sbr.rel (%p1173) target = $region92
        $region91: #{tpu_custom_call.1} parent=83 // pred_region
          %p1176 = scmp.lt.s32.totalorder %s32, 1
          %s1177 = scalar_select %p1176, %s32, 1
          %s1178 = smul.addr %s1177, 2
          %s1179 = smul.addr %s1178, 8
          %s1180 = scalar_lea.vmem %s9, %s1179
        $region92: #{tpu_custom_call.1} parent=83 // pred_fallthru
          _
      $region84: #{tpu_custom_call.1} parent=5 // pred_fallthru
        _
    $region6: #{tpu_custom_call.1} parent=1 // loop_footer
      %s30 = sadd.s32 1, %s26
    $region7: #{tpu_custom_call.1} parent=1 // loop_footer_branch
      %25 = sbr.rel target = $region3
    $region8: #{tpu_custom_call.1} parent=1 // loop_exit
      _
    %1181 = vsyncpa [#allocation3], 1
    %s1182 = scalar_lea.sflag [#allocation3], 1
    %1183 = vsyncpa %s1182, 1
    %1184 = vsyncpa [#allocation6], 1
    %s1185 = scalar_lea.sflag [#allocation6], 1
    %1186 = vsyncpa %s1185, 1
    %1187 = vsyncpa [#allocation9], 1
    %1188 = vsyncpa [#allocation4], 1
    %s1189 = scalar_lea.sflag [#allocation4], 1
    %1190 = vsyncpa %s1189, 1

</llo_original>
